<compile_context>
chip_gen: v7x
topology: tpu7x:2x2x1
jax: 0.10.0
libtpu: 0.0.40
codegen_flags: <defaults>
</compile_context>

<pallas_src>
import jax
import jax.numpy as jnp
from jax import lax
from jax.experimental import pallas as pl
from jax.experimental.pallas import tpu as pltpu


def dqn_kernel(x_ref, w1_ref, w2_ref, w3_ref, b_ref, o_ref):
    """One batch tile of the 3-layer MLP, computed batch-on-lanes.

    x_ref : (tb, n_obs)            input tile, natural layout
    w1_ref: (h1, n_obs)            PyTorch [out, in] layout
    w2_ref: (h2, h1)
    w3_ref: (n_act, h2)
    b_ref : (h1 + h2 + n_act, 1)   packed biases (column vectors)
    o_ref : (n_act, tb)            output tile, batch on lanes
    """
    h1 = w1_ref.shape[0]
    h2 = w2_ref.shape[0]
    n_act = w3_ref.shape[0]

    # Layer 1: W1 @ x^T via an "NT" contraction (contract feature dim of both
    # operands).  No explicit transpose of x is materialized; result lands with
    # batch on lanes.  MXU matmul, f32 accumulate; bias is an (h1, 1) column
    # broadcast along lanes on the VPU.
    a = lax.dot_general(
        w1_ref[...], x_ref[...],
        dimension_numbers=(((1,), (1,)), ((), ())),
        preferred_element_type=jnp.float32)
    a = jnp.maximum(a + b_ref[0:h1, :], 0.0)
    # Layer 2: W2 @ a + b2, ReLU
    a = jnp.dot(w2_ref[...], a, preferred_element_type=jnp.float32)
    a = jnp.maximum(a + b_ref[h1:h1 + h2, :], 0.0)
    # Layer 3: W3 @ a + b3 (no activation), lane-dense store.
    a = jnp.dot(w3_ref[...], a, preferred_element_type=jnp.float32)
    o_ref[...] = (a + b_ref[h1 + h2:h1 + h2 + n_act, :]).astype(o_ref.dtype)


def _pick_batch_tile(B):
    """Pick a lane-dense batch tile that divides B.

    - tiles (when tiling at all) are multiples of 128 (lane width / block rule);
    - per-grid-step overhead is ~0.35us, so keep tiles >= 512 rows when possible;
    - aim for >= 2 grid programs on large batches so the "parallel" axis can be
      sharded across two TensorCores (v7x megacore).
    """
    if B <= 1024 or B % 128 != 0:
        return B                       # single tile, grid == 1
    start = min(2048, (B // 2) // 128 * 128)
    for t in range(start, 0, -128):    # largest 128-multiple divisor <= start
        if B % t == 0:
            return t
    return B


def _rup(v, m):
    return -(-v // m) * m


def dqn_forward(x, params, *, tb=None):
    """DQN forward: x (B, n_obs) -> (B, n_act). Weights in PyTorch [out, in] layout."""
    w1, b1, w2, b2, w3, b3 = params
    B, n_obs = x.shape
    h1 = w1.shape[0]
    h2 = w2.shape[0]
    n_act = w3.shape[0]

    if tb is None:
        tb = _pick_batch_tile(B)
    assert tb == B or (B % tb == 0 and tb % 128 == 0), (B, tb)
    grid = (B // tb,)

    # Pack the three biases into one operand (fewer DMA descriptors / buffers).
    b_packed = jnp.concatenate([b1, b2, b3]).reshape(h1 + h2 + n_act, 1)

    # Advisory cost hint so XLA schedules this custom call sensibly.
    flops = 2 * B * (n_obs * h1 + h1 * h2 + h2 * n_act)
    bytes_accessed = 4 * (B * (n_obs + n_act)
                          + h1 * n_obs + h2 * h1 + n_act * h2
                          + (h1 + h2 + n_act))
    cost = pl.CostEstimate(flops=flops, transcendentals=0,
                           bytes_accessed=bytes_accessed)

    # VMEM budget, counting (8,128)-padded tiles (matters on v7x: 64 MiB
    # physical / 32 MiB scoped default).  Only raise the limit when a large
    # tile actually needs it.
    lane, sub = 128, 8
    vmem_needed = 4 * (
        2 * _rup(tb, sub) * _rup(n_obs, lane)            # x tile (double-buffered)
        + 2 * _rup(n_act, sub) * _rup(tb, lane)          # out tile (double-buffered)
        + 2 * (_rup(h1, sub) * _rup(n_obs, lane)
               + _rup(h2, sub) * _rup(h1, lane)
               + _rup(n_act, sub) * _rup(h2, lane)
               + _rup(h1 + h2 + n_act, sub) * lane)      # resident weights + bias
        + (_rup(h1, sub) + _rup(h2, sub)) * _rup(tb, lane))  # activation slabs
    vmem_limit = None
    if vmem_needed > 32 * 1024 * 1024:
        vmem_limit = min(2 * vmem_needed, 64 * 1024 * 1024)

    outT = pl.pallas_call(
        dqn_kernel,
        out_shape=jax.ShapeDtypeStruct((n_act, B), x.dtype),
        grid_spec=pltpu.PrefetchScalarGridSpec(
            num_scalar_prefetch=0,
            grid=grid,
            in_specs=[
                pl.BlockSpec((tb, n_obs), lambda i: (i, 0)),           # x tile (natural layout)
                # Weights & packed bias are grid-invariant (constant index map)
                # so they stay resident in VMEM across all batch tiles.
                pl.BlockSpec((h1, n_obs), lambda i: (0, 0)),           # W1 [out, in]
                pl.BlockSpec((h2, h1), lambda i: (0, 0)),              # W2
                pl.BlockSpec((n_act, h2), lambda i: (0, 0)),           # W3
                pl.BlockSpec((h1 + h2 + n_act, 1), lambda i: (0, 0)),  # packed biases
            ],
            out_specs=pl.BlockSpec((n_act, tb), lambda i: (0, i)),     # lane-dense out
        ),
        compiler_params=pltpu.CompilerParams(
            dimension_semantics=("parallel",),
            vmem_limit_bytes=vmem_limit),
        cost_estimate=cost,
    )(x, w1, w2, w3, b_packed)

    # Only the tiny (n_act, B) result is transposed back to (B, n_act).
    return outT.T


def init_params(key, n_observations, n_actions, hidden1=32, hidden2=16,
                dtype=jnp.float32):
    """nn.Linear-style init: W [out, in], b [out], U(-1/sqrt(fan_in), +bound)."""
    def linear(k, fan_in, fan_out):
        kw, kb = jax.random.split(k)
        bound = 1.0 / (fan_in ** 0.5)
        w = jax.random.uniform(kw, (fan_out, fan_in), dtype, -bound, bound)
        b = jax.random.uniform(kb, (fan_out,), dtype, -bound, bound)
        return w, b

    k1, k2, k3 = jax.random.split(key, 3)
    w1, b1 = linear(k1, n_observations, hidden1)
    w2, b2 = linear(k2, hidden1, hidden2)
    w3, b3 = linear(k3, hidden2, n_actions)
    return (w1, b1, w2, b2, w3, b3)


def dqn_reference(x, params):
    w1, b1, w2, b2, w3, b3 = params
    h = jnp.maximum(x @ w1.T + b1, 0.0)
    h = jnp.maximum(h @ w2.T + b2, 0.0)
    return h @ w3.T + b3


if __name__ == "__main__":
    key = jax.random.PRNGKey(0)
    kx, kp = jax.random.split(key)

    B, n_observations, n_actions = 8, 8, 4   # small CartPole-like sizes
    x = jax.random.normal(kx, (B, n_observations), dtype=jnp.float32)
    params = init_params(kp, n_observations, n_actions, hidden1=32, hidden2=16)

    out = dqn_forward(x, params)
    out = jax.block_until_ready(out)

    ref = dqn_reference(x, params)
    assert out.shape == (B, n_actions)
    assert jnp.allclose(out, ref, atol=1e-5, rtol=1e-5)

    print("KERNEL_OK")
</pallas_src>

<mosaic_0001>
module attributes {stable_mosaic.version = 11 : i64} {
  func.func @dqn_kernel(%arg0: i32, %arg1: memref<8x8xf32, #tpu.memory_space<vmem>>, %arg2: memref<32x8xf32, #tpu.memory_space<vmem>>, %arg3: memref<16x32xf32, #tpu.memory_space<vmem>>, %arg4: memref<4x16xf32, #tpu.memory_space<vmem>>, %arg5: memref<52x1xf32, #tpu.memory_space<vmem>>, %arg6: memref<4x8xf32, #tpu.memory_space<vmem>>) attributes {dimension_semantics = [#tpu.dimension_semantics<parallel>], iteration_bounds = array<i64: 1>, scalar_prefetch = 0 : i64, scratch_operands = 0 : i64, tpu.core_type = #tpu.core_type<tc>, window_params = [{transform_indices = @transform_0, window_bounds = array<i64: 8, 8>}, {pipeline_mode = #tpu.pipeline_mode<synchronous>, transform_indices = @transform_1, window_bounds = array<i64: 32, 8>}, {pipeline_mode = #tpu.pipeline_mode<synchronous>, transform_indices = @transform_2, window_bounds = array<i64: 16, 32>}, {pipeline_mode = #tpu.pipeline_mode<synchronous>, transform_indices = @transform_3, window_bounds = array<i64: 4, 16>}, {pipeline_mode = #tpu.pipeline_mode<synchronous>, transform_indices = @transform_4, window_bounds = array<i64: 52, 1>}, {transform_indices = @transform_5, window_bounds = array<i64: 4, 8>}]} {
    %c0 = arith.constant 0 : index
    %c0_0 = arith.constant 0 : index
    %0 = vector.load %arg2[%c0, %c0_0] : memref<32x8xf32, #tpu.memory_space<vmem>>, vector<32x8xf32>
    %c0_1 = arith.constant 0 : index
    %c0_2 = arith.constant 0 : index
    %1 = vector.load %arg1[%c0_1, %c0_2] : memref<8x8xf32, #tpu.memory_space<vmem>>, vector<8x8xf32>
    %cst = arith.constant dense<0.000000e+00> : vector<32x8xf32>
    %2 = tpu.matmul %0, %1, %cst {dimension_numbers = #tpu.dot_dimension_numbers<[1], [1], [0], [0], [0, 0, 1, 0], [], []>} : vector<32x8xf32>, vector<8x8xf32>, vector<32x8xf32> -> vector<32x8xf32>
    %c0_3 = arith.constant 0 : index
    %c0_4 = arith.constant 0 : index
    %3 = vector.load %arg5[%c0_3, %c0_4] : memref<52x1xf32, #tpu.memory_space<vmem>>, vector<32x1xf32>
    %4 = vector.broadcast %3 : vector<32x1xf32> to vector<32x8xf32>
    %5 = arith.addf %2, %4 : vector<32x8xf32>
    %cst_5 = arith.constant 0.000000e+00 : f32
    %6 = vector.broadcast %cst_5 : f32 to vector<32x8xf32>
    %7 = arith.maximumf %5, %6 : vector<32x8xf32>
    %c0_6 = arith.constant 0 : index
    %c0_7 = arith.constant 0 : index
    %8 = vector.load %arg3[%c0_6, %c0_7] : memref<16x32xf32, #tpu.memory_space<vmem>>, vector<16x32xf32>
    %cst_8 = arith.constant dense<0.000000e+00> : vector<16x8xf32>
    %9 = tpu.matmul %8, %7, %cst_8 {dimension_numbers = #tpu.dot_dimension_numbers<[1], [0], [0], [1], [0, 0, 1, 1], [], []>} : vector<16x32xf32>, vector<32x8xf32>, vector<16x8xf32> -> vector<16x8xf32>
    %c32 = arith.constant 32 : index
    %c0_9 = arith.constant 0 : index
    %10 = vector.load %arg5[%c32, %c0_9] : memref<52x1xf32, #tpu.memory_space<vmem>>, vector<16x1xf32>
    %11 = vector.broadcast %10 : vector<16x1xf32> to vector<16x8xf32>
    %12 = arith.addf %9, %11 : vector<16x8xf32>
    %cst_10 = arith.constant 0.000000e+00 : f32
    %13 = vector.broadcast %cst_10 : f32 to vector<16x8xf32>
    %14 = arith.maximumf %12, %13 : vector<16x8xf32>
    %c0_11 = arith.constant 0 : index
    %c0_12 = arith.constant 0 : index
    %15 = vector.load %arg4[%c0_11, %c0_12] : memref<4x16xf32, #tpu.memory_space<vmem>>, vector<4x16xf32>
    %cst_13 = arith.constant dense<0.000000e+00> : vector<4x8xf32>
    %16 = tpu.matmul %15, %14, %cst_13 {dimension_numbers = #tpu.dot_dimension_numbers<[1], [0], [0], [1], [0, 0, 1, 1], [], []>} : vector<4x16xf32>, vector<16x8xf32>, vector<4x8xf32> -> vector<4x8xf32>
    %c48 = arith.constant 48 : index
    %c0_14 = arith.constant 0 : index
    %17 = vector.load %arg5[%c48, %c0_14] : memref<52x1xf32, #tpu.memory_space<vmem>>, vector<4x1xf32>
    %18 = vector.broadcast %17 : vector<4x1xf32> to vector<4x8xf32>
    %19 = arith.addf %16, %18 : vector<4x8xf32>
    %c0_15 = arith.constant 0 : index
    %c0_16 = arith.constant 0 : index
    %20 = vector.load %arg6[%c0_15, %c0_16] : memref<4x8xf32, #tpu.memory_space<vmem>>, vector<4x8xf32>
    tpu.vector_store %arg6[%c0_15, %c0_16], %19 {strides = array<i32>} : memref<4x8xf32, #tpu.memory_space<vmem>>, vector<4x8xf32>,
    return
  }
  func.func @transform_0(%arg0: i32) -> (i32, i32) {
    %c0_i32 = arith.constant 0 : i32
    %c0_i32_0 = arith.constant 0 : i32
    return %arg0, %c0_i32 : i32, i32
  }
  func.func @transform_1(%arg0: i32) -> (i32, i32) {
    %c0_i32 = arith.constant 0 : i32
    %c0_i32_0 = arith.constant 0 : i32
    %c0_i32_1 = arith.constant 0 : i32
    return %c0_i32, %c0_i32_0 : i32, i32
  }
  func.func @transform_2(%arg0: i32) -> (i32, i32) {
    %c0_i32 = arith.constant 0 : i32
    %c0_i32_0 = arith.constant 0 : i32
    %c0_i32_1 = arith.constant 0 : i32
    return %c0_i32, %c0_i32_0 : i32, i32
  }
  func.func @transform_3(%arg0: i32) -> (i32, i32) {
    %c0_i32 = arith.constant 0 : i32
    %c0_i32_0 = arith.constant 0 : i32
    %c0_i32_1 = arith.constant 0 : i32
    return %c0_i32, %c0_i32_0 : i32, i32
  }
  func.func @transform_4(%arg0: i32) -> (i32, i32) {
    %c0_i32 = arith.constant 0 : i32
    %c0_i32_0 = arith.constant 0 : i32
    %c0_i32_1 = arith.constant 0 : i32
    return %c0_i32, %c0_i32_0 : i32, i32
  }
  func.func @transform_5(%arg0: i32) -> (i32, i32) {
    %c0_i32 = arith.constant 0 : i32
    %c0_i32_0 = arith.constant 0 : i32
    return %c0_i32, %arg0 : i32, i32
  }
}

</mosaic_0001>

<llo_original>
// kernel: tpu_custom_call.1
$region0: #{tpu_custom_call.1}
  #allocation0 [shape = 'u32[]', space=smem, size = 0x4, offset = 0x4, fixed_abs, tag = 'smem constant byte address 0x4 - core index']
  #allocation1 [shape = 'u32[144,128]{1,0:T(1,128)}', space=vmem, size = 0x12000, scoped, tag = 'internal scratch']
  %s0 = inlined_call_operand.vmem [shape: f32[8,8], index: 0, kind: input, shape index: {}]
  %s1 = inlined_call_operand.vmem [shape: f32[32,8], index: 1, kind: input, shape index: {}]
  %s2 = inlined_call_operand.vmem [shape: f32[16,32], index: 2, kind: input, shape index: {}]
  %s3 = inlined_call_operand.vmem [shape: f32[4,16], index: 3, kind: input, shape index: {}]
  %s4 = inlined_call_operand.vmem [shape: f32[52,1], index: 4, kind: input, shape index: {}]
  %s5 = inlined_call_operand.hbm [shape: f32[4,8], index: 5, kind: output, shape index: {}]
  %s6 = sld [smem:[#allocation0]]
  $region30: #{tpu_custom_call.1} parent=0
    _
  %s8 = ssub.s32 1, %s6
  %s9 = scalar_select 0, %s8, %s6
  $region1: #{tpu_custom_call.1} parent=0
    #allocation2 [shape = 'u8[2048]{0}', space=vmem, size = 0x800, scoped, tag = 'output window, operand 0, single buffered']
    #allocation3 [shape = 's32[1]{0}', space=sflag, size = 0x4, scoped, tag = 'scoped memory for tpu_custom_call.1']
    %10 = vsyncpa [#allocation3], 0
    // Predicated region
    $region2: #{tpu_custom_call.1} parent=1 // pred_check
      _
    $region3: #{tpu_custom_call.1} parent=1 // pred_check_branch
      %12 = sbr.rel (0) target = $region5
    $region4: #{tpu_custom_call.1} parent=1 // pred_region
      _
    $region5: #{tpu_custom_call.1} parent=1 // pred_fallthru
      _
    // Predicated region
    $region6: #{tpu_custom_call.1} parent=1 // pred_check
      _
    $region7: #{tpu_custom_call.1} parent=1 // pred_check_branch
      %14 = sbr.rel (0) target = $region9
    $region8: #{tpu_custom_call.1} parent=1 // pred_region
      _
    $region9: #{tpu_custom_call.1} parent=1 // pred_fallthru
      _
    // Predicated region
    $region10: #{tpu_custom_call.1} parent=1 // pred_check
      _
    $region11: #{tpu_custom_call.1} parent=1 // pred_check_branch
      %16 = sbr.rel (0) target = $region13
    $region12: #{tpu_custom_call.1} parent=1 // pred_region
      _
    $region13: #{tpu_custom_call.1} parent=1 // pred_fallthru
      _
    // Predicated region
    $region14: #{tpu_custom_call.1} parent=1 // pred_check
      _
    $region15: #{tpu_custom_call.1} parent=1 // pred_check_branch
      %18 = sbr.rel (0) target = $region17
    $region16: #{tpu_custom_call.1} parent=1 // pred_region
      _
    $region17: #{tpu_custom_call.1} parent=1 // pred_fallthru
      _
    // Predicated region
    $region18: #{tpu_custom_call.1} parent=1 // pred_check
      _
    $region19: #{tpu_custom_call.1} parent=1 // pred_check_branch
      %20 = sbr.rel (0) target = $region21
    $region20: #{tpu_custom_call.1} parent=1 // pred_region
      _
    $region21: #{tpu_custom_call.1} parent=1 // pred_fallthru
      _
    %v21 = vld [vmem:[%s1] sm:$0xff]
    %v22 = vld [vmem:[%s1 + $0x8] sm:$0xff]
    %v23 = vld [vmem:[%s1 + $0x10] sm:$0xff]
    %v24 = vld [vmem:[%s1 + $0x18] sm:$0xff]
    %v25 = vld [vmem:[%s0] sm:$0xff]
    %v26 = vld [vmem:[%s4] sm:$0xff]
    %v27 = vld [vmem:[%s4 + $0x8] sm:$0xff]
    %v28 = vld [vmem:[%s4 + $0x10] sm:$0xff]
    %v29 = vld [vmem:[%s4 + $0x18] sm:$0xff]
    %31 = vset.pattern.permute.xlu0 0
    %32 = vperm.xlu0 %31, %v26
    %v33 = vpop.permute.xlu0 %32
    %36 = vset.pattern.permute.xlu0 0
    %37 = vperm.xlu0 %36, %v27
    %v38 = vpop.permute.xlu0 %37
    %41 = vset.pattern.permute.xlu0 0
    %42 = vperm.xlu0 %41, %v28
    %v43 = vpop.permute.xlu0 %42
    %46 = vset.pattern.permute.xlu0 0
    %47 = vperm.xlu0 %46, %v29
    %v48 = vpop.permute.xlu0 %47
    %vm50 = vcmask 64512
    %v52 = vsel %vm50, %v21, 0
    %v55 = vsel %vm50, %v22, 0
    %v58 = vsel %vm50, %v23, 0
    %v61 = vsel %vm50, %v24, 0
    %v64 = vsel %vm50, %v25, 0
    %66 = vmatprep.subr.mxu0 0.0
    %67 = vmatpush1.xpose.msra.mxu0 %v64
    %68 = vmatprep.subr.mxu0 0.0
    %69 = vmatpush1.xpose.msra.mxu0 0.0
    %70 = vmatprep.subr.mxu0 0.0
    %71 = vmatpush1.xpose.msra.mxu0 0.0
    %72 = vmatprep.subr.mxu0 0.0
    %73 = vmatpush1.xpose.msra.mxu0 0.0
    %74 = vmatprep.subr.mxu0 0.0
    %75 = vmatpush1.xpose.msra.mxu0 0.0
    %76 = vmatprep.subr.mxu0 0.0
    %77 = vmatpush1.xpose.msra.mxu0 0.0
    %78 = vmatprep.subr.mxu0 0.0
    %79 = vmatpush1.xpose.msra.mxu0 0.0
    %80 = vmatprep.subr.mxu0 0.0
    %81 = vmatpush1.xpose.msra.mxu0 0.0
    %82 = vmatprep.subr.mxu0 0.0
    %83 = vmatpush1.xpose.msra.mxu0 0.0
    %84 = vmatprep.subr.mxu0 0.0
    %85 = vmatpush1.xpose.msra.mxu0 0.0
    %86 = vmatprep.subr.mxu0 0.0
    %87 = vmatpush1.xpose.msra.mxu0 0.0
    %88 = vmatprep.subr.mxu0 0.0
    %89 = vmatpush1.xpose.msra.mxu0 0.0
    %90 = vmatprep.subr.mxu0 0.0
    %91 = vmatpush1.xpose.msra.mxu0 0.0
    %92 = vmatprep.subr.mxu0 0.0
    %93 = vmatpush1.xpose.msra.mxu0 0.0
    %94 = vmatprep.subr.mxu0 0.0
    %95 = vmatpush1.xpose.msra.mxu0 0.0
    %96 = vmatprep.subr.mxu0 0.0
    %97 = vmatpush1.xpose.msra.mxu0 0.0
    %98 = vmatprep.subr.mxu0 0.0
    %99 = vmatpush1.xpose.msra.mxu0 0.0
    %100 = vmatprep.subr.mxu0 0.0
    %101 = vmatpush1.xpose.msra.mxu0 0.0
    %102 = vmatprep.subr.mxu0 0.0
    %103 = vmatpush1.xpose.msra.mxu0 0.0
    %104 = vmatprep.subr.mxu0 0.0
    %105 = vmatpush1.xpose.msra.mxu0 0.0
    %106 = vmatprep.subr.mxu0 0.0
    %107 = vmatpush1.xpose.msra.mxu0 0.0
    %108 = vmatprep.subr.mxu0 0.0
    %109 = vmatpush1.xpose.msra.mxu0 0.0
    %110 = vmatprep.subr.mxu0 0.0
    %111 = vmatpush1.xpose.msra.mxu0 0.0
    %112 = vmatprep.subr.mxu0 0.0
    %113 = vmatpush1.xpose.msra.mxu0 0.0
    %114 = vmatprep.subr.mxu0 0.0
    %115 = vmatpush1.xpose.msra.mxu0 0.0
    %116 = vmatprep.subr.mxu0 0.0
    %117 = vmatpush1.xpose.msra.mxu0 0.0
    %118 = vmatprep.subr.mxu0 0.0
    %119 = vmatpush1.xpose.msra.mxu0 0.0
    %120 = vmatprep.subr.mxu0 0.0
    %121 = vmatpush1.xpose.msra.mxu0 0.0
    %122 = vmatprep.subr.mxu0 0.0
    %123 = vmatpush1.xpose.msra.mxu0 0.0
    %124 = vmatprep.subr.mxu0 0.0
    %125 = vmatpush1.xpose.msra.mxu0 0.0
    %126 = vmatprep.subr.mxu0 0.0
    %127 = vmatpush1.xpose.msra.mxu0 0.0
    %128 = vmatprep.subr.mxu0 0.0
    %129 = vmatpush1.xpose.msra.mxu0 0.0
    %130 = vmatprep.mubr.f32.mxu0 0.0
    %131 = vmatmul.mubr.f32.gmra.mrb[0].mxu0 %v52
    %v132 = vpop.f32.mrb[0].mxu0
    %v133 = vadd.f32 %v33, %v132
    %v134 = vpop.f32.mrb[0].mxu0
    %135 = vmatprep.mubr.f32.mxu0 0.0
    %136 = vmatmul.mubr.f32.gmra.mrb[0].mxu0 %v55
    %v137 = vpop.f32.mrb[0].mxu0
    %v138 = vadd.f32 %v38, %v137
    %v139 = vpop.f32.mrb[0].mxu0
    %140 = vmatprep.mubr.f32.mxu0 0.0
    %141 = vmatmul.mubr.f32.gmra.mrb[0].mxu0 %v58
    %v142 = vpop.f32.mrb[0].mxu0
    %v143 = vadd.f32 %v43, %v142
    %v144 = vpop.f32.mrb[0].mxu0
    %145 = vmatprep.mubr.f32.mxu0 0.0
    %146 = vmatmul.mubr.f32.gmra.mrb[0].mxu0 %v61
    %v147 = vpop.f32.mrb[0].mxu0
    %v148 = vadd.f32 %v48, %v147
    %v149 = vpop.f32.mrb[0].mxu0
    %150 = vdwg.mxu0
    %v151 = vmax.f32 %v133, 0.0
    %v152 = vmax.f32 %v138, 0.0
    %v153 = vmax.f32 %v143, 0.0
    %v154 = vmax.f32 %v148, 0.0
    %v155 = vld [vmem:[%s2] sm:$0xff]
    %v156 = vld [vmem:[%s2 + $0x8] sm:$0xff]
    %v157 = vld [vmem:[%s4 + $0x20] sm:$0xff]
    %v158 = vld [vmem:[%s4 + $0x28] sm:$0xff]
    %160 = vset.pattern.permute.xlu0 0
    %161 = vperm.xlu0 %160, %v157
    %v162 = vpop.permute.xlu0 %161
    %165 = vset.pattern.permute.xlu0 0
    %166 = vperm.xlu0 %165, %v158
    %v167 = vpop.permute.xlu0 %166
    %vm169 = vcmask 261120
    %v171 = vsel %vm169, %v155, 0
    %v174 = vsel %vm169, %v156, 0
    %176 = vmatprep.subr.mxu0 0.0
    %177 = vmatpush1.msra.mxu0 %v151
    %178 = vmatprep.subr.mxu0 0.0
    %179 = vmatpush1.msra.mxu0 %v152
    %180 = vmatprep.subr.mxu0 0.0
    %181 = vmatpush1.msra.mxu0 %v153
    %182 = vmatprep.subr.mxu0 0.0
    %183 = vmatpush1.msra.mxu0 %v154
    %184 = vmatprep.subr.mxu0 0.0
    %185 = vmatpush1.msra.mxu0 0.0
    %186 = vmatprep.subr.mxu0 0.0
    %187 = vmatpush1.msra.mxu0 0.0
    %188 = vmatprep.subr.mxu0 0.0
    %189 = vmatpush1.msra.mxu0 0.0
    %190 = vmatprep.subr.mxu0 0.0
    %191 = vmatpush1.msra.mxu0 0.0
    %192 = vmatprep.subr.mxu0 0.0
    %193 = vmatpush1.msra.mxu0 0.0
    %194 = vmatprep.subr.mxu0 0.0
    %195 = vmatpush1.msra.mxu0 0.0
    %196 = vmatprep.subr.mxu0 0.0
    %197 = vmatpush1.msra.mxu0 0.0
    %198 = vmatprep.subr.mxu0 0.0
    %199 = vmatpush1.msra.mxu0 0.0
    %200 = vmatprep.subr.mxu0 0.0
    %201 = vmatpush1.msra.mxu0 0.0
    %202 = vmatprep.subr.mxu0 0.0
    %203 = vmatpush1.msra.mxu0 0.0
    %204 = vmatprep.subr.mxu0 0.0
    %205 = vmatpush1.msra.mxu0 0.0
    %206 = vmatprep.subr.mxu0 0.0
    %207 = vmatpush1.msra.mxu0 0.0
    %208 = vmatprep.subr.mxu0 0.0
    %209 = vmatpush1.msra.mxu0 0.0
    %210 = vmatprep.subr.mxu0 0.0
    %211 = vmatpush1.msra.mxu0 0.0
    %212 = vmatprep.subr.mxu0 0.0
    %213 = vmatpush1.msra.mxu0 0.0
    %214 = vmatprep.subr.mxu0 0.0
    %215 = vmatpush1.msra.mxu0 0.0
    %216 = vmatprep.subr.mxu0 0.0
    %217 = vmatpush1.msra.mxu0 0.0
    %218 = vmatprep.subr.mxu0 0.0
    %219 = vmatpush1.msra.mxu0 0.0
    %220 = vmatprep.subr.mxu0 0.0
    %221 = vmatpush1.msra.mxu0 0.0
    %222 = vmatprep.subr.mxu0 0.0
    %223 = vmatpush1.msra.mxu0 0.0
    %224 = vmatprep.subr.mxu0 0.0
    %225 = vmatpush1.msra.mxu0 0.0
    %226 = vmatprep.subr.mxu0 0.0
    %227 = vmatpush1.msra.mxu0 0.0
    %228 = vmatprep.subr.mxu0 0.0
    %229 = vmatpush1.msra.mxu0 0.0
    %230 = vmatprep.subr.mxu0 0.0
    %231 = vmatpush1.msra.mxu0 0.0
    %232 = vmatprep.subr.mxu0 0.0
    %233 = vmatpush1.msra.mxu0 0.0
    %234 = vmatprep.subr.mxu0 0.0
    %235 = vmatpush1.msra.mxu0 0.0
    %236 = vmatprep.subr.mxu0 0.0
    %237 = vmatpush1.msra.mxu0 0.0
    %238 = vmatprep.subr.mxu0 0.0
    %239 = vmatpush1.msra.mxu0 0.0
    %240 = vmatprep.mubr.f32.mxu0 0.0
    %241 = vmatmul.mubr.f32.gmra.mrb[0].mxu0 %v171
    %v242 = vpop.f32.mrb[0].mxu0
    %v243 = vadd.f32 %v162, %v242
    %v244 = vpop.f32.mrb[0].mxu0
    %245 = vmatprep.mubr.f32.mxu0 0.0
    %246 = vmatmul.mubr.f32.gmra.mrb[0].mxu0 %v174
    %v247 = vpop.f32.mrb[0].mxu0
    %v248 = vadd.f32 %v167, %v247
    %v249 = vpop.f32.mrb[0].mxu0
    %250 = vdwg.mxu0
    %v251 = vmax.f32 %v243, 0.0
    %v252 = vmax.f32 %v248, 0.0
    %v253 = vld [vmem:[%s3] sm:$0xf]
    %v254 = vld [vmem:[%s4 + $0x30] sm:$0xf]
    %256 = vset.pattern.permute.xlu0 0
    %257 = vperm.xlu0 %256, %v254
    %v258 = vpop.permute.xlu0 %257
    %vm260 = vcmask 130048
    %v262 = vsel %vm260, %v253, 0
    %264 = vmatprep.subr.mxu0 0.0
    %265 = vmatpush1.msra.mxu0 %v251
    %266 = vmatprep.subr.mxu0 0.0
    %267 = vmatpush1.msra.mxu0 %v252
    %268 = vmatprep.subr.mxu0 0.0
    %269 = vmatpush1.msra.mxu0 0.0
    %270 = vmatprep.subr.mxu0 0.0
    %271 = vmatpush1.msra.mxu0 0.0
    %272 = vmatprep.subr.mxu0 0.0
    %273 = vmatpush1.msra.mxu0 0.0
    %274 = vmatprep.subr.mxu0 0.0
    %275 = vmatpush1.msra.mxu0 0.0
    %276 = vmatprep.subr.mxu0 0.0
    %277 = vmatpush1.msra.mxu0 0.0
    %278 = vmatprep.subr.mxu0 0.0
    %279 = vmatpush1.msra.mxu0 0.0
    %280 = vmatprep.subr.mxu0 0.0
    %281 = vmatpush1.msra.mxu0 0.0
    %282 = vmatprep.subr.mxu0 0.0
    %283 = vmatpush1.msra.mxu0 0.0
    %284 = vmatprep.subr.mxu0 0.0
    %285 = vmatpush1.msra.mxu0 0.0
    %286 = vmatprep.subr.mxu0 0.0
    %287 = vmatpush1.msra.mxu0 0.0
    %288 = vmatprep.subr.mxu0 0.0
    %289 = vmatpush1.msra.mxu0 0.0
    %290 = vmatprep.subr.mxu0 0.0
    %291 = vmatpush1.msra.mxu0 0.0
    %292 = vmatprep.subr.mxu0 0.0
    %293 = vmatpush1.msra.mxu0 0.0
    %294 = vmatprep.subr.mxu0 0.0
    %295 = vmatpush1.msra.mxu0 0.0
    %296 = vmatprep.subr.mxu0 0.0
    %297 = vmatpush1.msra.mxu0 0.0
    %298 = vmatprep.subr.mxu0 0.0
    %299 = vmatpush1.msra.mxu0 0.0
    %300 = vmatprep.subr.mxu0 0.0
    %301 = vmatpush1.msra.mxu0 0.0
    %302 = vmatprep.subr.mxu0 0.0
    %303 = vmatpush1.msra.mxu0 0.0
    %304 = vmatprep.subr.mxu0 0.0
    %305 = vmatpush1.msra.mxu0 0.0
    %306 = vmatprep.subr.mxu0 0.0
    %307 = vmatpush1.msra.mxu0 0.0
    %308 = vmatprep.subr.mxu0 0.0
    %309 = vmatpush1.msra.mxu0 0.0
    %310 = vmatprep.subr.mxu0 0.0
    %311 = vmatpush1.msra.mxu0 0.0
    %312 = vmatprep.subr.mxu0 0.0
    %313 = vmatpush1.msra.mxu0 0.0
    %314 = vmatprep.subr.mxu0 0.0
    %315 = vmatpush1.msra.mxu0 0.0
    %316 = vmatprep.subr.mxu0 0.0
    %317 = vmatpush1.msra.mxu0 0.0
    %318 = vmatprep.subr.mxu0 0.0
    %319 = vmatpush1.msra.mxu0 0.0
    %320 = vmatprep.subr.mxu0 0.0
    %321 = vmatpush1.msra.mxu0 0.0
    %322 = vmatprep.subr.mxu0 0.0
    %323 = vmatpush1.msra.mxu0 0.0
    %324 = vmatprep.subr.mxu0 0.0
    %325 = vmatpush1.msra.mxu0 0.0
    %326 = vmatprep.subr.mxu0 0.0
    %327 = vmatpush1.msra.mxu0 0.0
    %328 = vmatprep.mubr.f32.mxu0 0.0
    %329 = vmatmul.mubr.f32.gmra.mrb[0].mxu0 %v262
    %v330 = vpop.f32.mrb[0].mxu0
    %v331 = vadd.f32 %v258, %v330
    %v332 = vpop.f32.mrb[0].mxu0
    %333 = vdwg.mxu0
    %vm334 = vcmask 60416
    %335 = vst.msk [vmem:[#allocation2] sm:$0xf] %vm334, %v331
    // Predicated region
    $region22: #{tpu_custom_call.1} parent=1 // pred_check
      _
    $region23: #{tpu_custom_call.1} parent=1 // pred_check_branch
      %337 = sbr.rel (0) target = $region25
    $region24: #{tpu_custom_call.1} parent=1 // pred_region
      %s339 = ssub.s32 64, 64
      %340 = vsyncadd [#allocation3], %s339
      %s342 = sshll.u32 [#allocation2], 4
      %s343 = int_to_ptr.vmem [resolvable:$true] %s342
      %345 = dma.vmem_to_hbm [thread:$0]  %s343, 64, %s5, [#allocation3]
    $region25: #{tpu_custom_call.1} parent=1 // pred_fallthru
      _
    // Predicated region
    $region26: #{tpu_custom_call.1} parent=1 // pred_check
      _
    $region27: #{tpu_custom_call.1} parent=1 // pred_check_branch
      %347 = sbr.rel (0) target = $region29
    $region28: #{tpu_custom_call.1} parent=1 // pred_region
      %348 = dma.done [#allocation3], 64
    $region29: #{tpu_custom_call.1} parent=1 // pred_fallthru
      _
    %349 = vsyncpa [#allocation3], 1

</llo_original>
